<compile_context>
chip_gen: v5e
topology: v5e:2x2
jax: 0.10.0
libtpu: 0.0.40
codegen_flags: <defaults>
</compile_context>

<pallas_src>
import functools

import jax
import jax.numpy as jnp
from jax.experimental import pallas as pl
from jax.experimental.pallas import tpu as pltpu


def _dist_linear_kernel(x_ref, wt_ref, o_ref):
    # x_ref : (tm, D)   one tile of input rows, full feature dim
    # wt_ref: (D, tn)   one tile of (pre-transposed) weight columns, full D
    # o_ref : (tm, tn)  scores tile
    x = x_ref[...].astype(jnp.float32)          # (tm, D)
    wt = wt_ref[...].astype(jnp.float32)        # (D, tn)

    # L2 norms: per input row, per class column (= per class row of original W).
    x_norm = jnp.sqrt(jnp.sum(x * x, axis=1, keepdims=True))      # (tm, 1)
    w_norm = jnp.sqrt(jnp.sum(wt * wt, axis=0, keepdims=True))    # (1, tn)

    # Approx reciprocal goes to the EUP slot; fold the 10x scale into x's scale.
    inv_x = pl.reciprocal(x_norm + 1e-5, approx=True)             # (tm, 1)
    inv_w = pl.reciprocal(w_norm + 1e-5, approx=True)             # (1, tn)

    x_n = (x * (10.0 * inv_x)).astype(jnp.bfloat16)               # (tm, D)
    w_n = (wt * inv_w).astype(jnp.bfloat16)                       # (D, tn)

    # MXU matmul, bf16 operands, f32 accumulation. RHS is already lane-dense.
    o_ref[...] = jnp.dot(
        x_n, w_n, preferred_element_type=jnp.float32
    ).astype(o_ref.dtype)


def _round_up(v, m):
    return ((v + m - 1) // m) * m


@functools.partial(jax.jit, static_argnames=("tm_max", "tn_max"))
def dist_linear(x, weight, *, tm_max=512, tn_max=512):
    """x: (N, indim), weight: (outdim, indim) -> scores (N, outdim) in f32."""
    n, indim = x.shape
    outdim, indim_w = weight.shape
    assert indim == indim_w

    # Pad every dim to a multiple of 128: lane-dense output stores, MXU-shaped
    # tiles, and (8,128)-compliant BlockSpecs even at tiny shapes.
    n_p = _round_up(n, 128)
    o_p = _round_up(outdim, 128)
    d_p = _round_up(indim, 128)

    x_p = jnp.zeros((n_p, d_p), x.dtype).at[:n, :indim].set(x)
    # Transpose the weight ONCE in the wrapper -> (D, O): the kernel never
    # transposes a VMEM tile, and the MXU RHS / output are lane-dense in outdim.
    wt_p = jnp.zeros((d_p, o_p), weight.dtype).at[:indim, :outdim].set(weight.T)

    # Tile sizes: full D per block; tm/tn capped for v7x's smaller VMEM
    # (2 bufs x (tm*D + D*tn)*4B + out stays well under the limit below).
    tm = min(tm_max, n_p)
    tn = min(tn_max, o_p)
    grid = (n_p // tm, o_p // tn)

    itemsize = x_p.dtype.itemsize
    cost = pl.CostEstimate(
        flops=2 * n_p * o_p * d_p,
        transcendentals=n_p + o_p * grid[0],       # x norms once, w norms per N-tile
        bytes_accessed=(n_p * d_p + d_p * o_p * grid[0]) * itemsize + n_p * o_p * 4,
    )

    out_p = pl.pallas_call(
        _dist_linear_kernel,
        out_shape=jax.ShapeDtypeStruct((n_p, o_p), jnp.float32),
        grid_spec=pl.GridSpec(
            grid=grid,
            in_specs=[
                pl.BlockSpec((tm, d_p), lambda i, j: (i, 0)),   # x tile
                pl.BlockSpec((d_p, tn), lambda i, j: (0, j)),   # W^T tile
            ],
            out_specs=pl.BlockSpec((tm, tn), lambda i, j: (i, j)),
        ),
        compiler_params=pltpu.CompilerParams(
            # No reduction axis (D stays whole) -> both axes parallel; lets
            # v7x shard grid steps across its two TensorCores.
            dimension_semantics=("parallel", "parallel"),
            # Sized for v7x (64 MiB physical VMEM); plenty of headroom on
            # v5e/v6e (128 MiB) for the default 512x512 tiles at D up to ~4K.
            vmem_limit_bytes=48 * 1024 * 1024,
        ),
        cost_estimate=cost,
    )(x_p, wt_p)

    # Slice the padding back off (padded rows/cols are exact zeros, discarded).
    return out_p[:n, :outdim]


if __name__ == "__main__":
    key = jax.random.PRNGKey(0)
    k_x, k_w = jax.random.split(key)

    N, INDIM, OUTDIM = 8, 32, 16   # small shapes consistent with nn.Linear(indim, outdim)

    x = jax.random.normal(k_x, (N, INDIM), dtype=jnp.float32)
    # Deterministic synthetic weight (stand-in for nn.Linear's kaiming-uniform init).
    weight = jax.random.uniform(
        k_w, (OUTDIM, INDIM), dtype=jnp.float32, minval=-0.1, maxval=0.1
    )

    scores = dist_linear(x, weight)
    scores = jax.block_until_ready(scores)

    # Pure-JAX f32 reference check. Tolerance loosened for bf16 MXU operands +
    # approx reciprocal (scores live in [-10, 10]).
    x_n = x / (jnp.linalg.norm(x, axis=1, keepdims=True) + 1e-5)
    w_n = weight / (jnp.linalg.norm(weight, axis=1, keepdims=True) + 1e-5)
    ref = 10.0 * (x_n @ w_n.T)
    assert scores.shape == ref.shape, "shape mismatch vs reference"
    assert jnp.allclose(scores, ref, atol=1e-1, rtol=5e-2), "mismatch vs reference"

    print("KERNEL_OK")
</pallas_src>

<mosaic_0001>
module attributes {stable_mosaic.version = 11 : i64} {
  func.func @_dist_linear_kernel(%arg0: i32, %arg1: i32, %arg2: memref<128x128xf32, #tpu.memory_space<vmem>>, %arg3: memref<128x128xf32, #tpu.memory_space<vmem>>, %arg4: memref<128x128xf32, #tpu.memory_space<vmem>>) attributes {dimension_semantics = [#tpu.dimension_semantics<parallel>, #tpu.dimension_semantics<parallel>], iteration_bounds = array<i64: 1, 1>, scalar_prefetch = 0 : i64, scratch_operands = 0 : i64, tpu.core_type = #tpu.core_type<tc>, window_params = [{transform_indices = @transform_0, window_bounds = array<i64: 128, 128>}, {transform_indices = @transform_1, window_bounds = array<i64: 128, 128>}, {transform_indices = @transform_2, window_bounds = array<i64: 128, 128>}]} {
    %c0 = arith.constant 0 : index
    %c0_0 = arith.constant 0 : index
    %0 = vector.load %arg2[%c0, %c0_0] : memref<128x128xf32, #tpu.memory_space<vmem>>, vector<128x128xf32>
    %c0_1 = arith.constant 0 : index
    %c0_2 = arith.constant 0 : index
    %1 = vector.load %arg3[%c0_1, %c0_2] : memref<128x128xf32, #tpu.memory_space<vmem>>, vector<128x128xf32>
    %2 = arith.mulf %0, %0 : vector<128x128xf32>
    %cst = arith.constant dense<0.000000e+00> : vector<128xf32>
    %3 = vector.multi_reduction <add>, %2, %cst [1] : vector<128x128xf32> to vector<128xf32>
    %4 = vector.shape_cast %3 : vector<128xf32> to vector<128x1xf32>
    %5 = math.sqrt %4 : vector<128x1xf32>
    %6 = arith.mulf %1, %1 : vector<128x128xf32>
    %cst_3 = arith.constant dense<0.000000e+00> : vector<128xf32>
    %7 = vector.multi_reduction <add>, %6, %cst_3 [0] : vector<128x128xf32> to vector<128xf32>
    %8 = vector.shape_cast %7 : vector<128xf32> to vector<1x128xf32>
    %9 = math.sqrt %8 : vector<1x128xf32>
    %cst_4 = arith.constant 9.99999974E-6 : f32
    %10 = vector.broadcast %cst_4 : f32 to vector<128x1xf32>
    %11 = arith.addf %5, %10 : vector<128x1xf32>
    %12 = tpu.reciprocal %11 {approx = true} : vector<128x1xf32> -> vector<128x1xf32>
    %cst_5 = arith.constant 9.99999974E-6 : f32
    %13 = vector.broadcast %cst_5 : f32 to vector<1x128xf32>
    %14 = arith.addf %9, %13 : vector<1x128xf32>
    %15 = tpu.reciprocal %14 {approx = true} : vector<1x128xf32> -> vector<1x128xf32>
    %cst_6 = arith.constant 1.000000e+01 : f32
    %16 = vector.broadcast %cst_6 : f32 to vector<128x1xf32>
    %17 = arith.mulf %16, %12 : vector<128x1xf32>
    %18 = vector.broadcast %17 : vector<128x1xf32> to vector<128x128xf32>
    %19 = arith.mulf %0, %18 : vector<128x128xf32>
    %20 = arith.truncf %19 : vector<128x128xf32> to vector<128x128xbf16>
    %21 = vector.broadcast %15 : vector<1x128xf32> to vector<128x128xf32>
    %22 = arith.mulf %1, %21 : vector<128x128xf32>
    %23 = arith.truncf %22 : vector<128x128xf32> to vector<128x128xbf16>
    %cst_7 = arith.constant dense<0.000000e+00> : vector<128x128xf32>
    %24 = tpu.matmul %20, %23, %cst_7 {dimension_numbers = #tpu.dot_dimension_numbers<[1], [0], [0], [1], [0, 0, 1, 1], [], []>} : vector<128x128xbf16>, vector<128x128xbf16>, vector<128x128xf32> -> vector<128x128xf32>
    %c0_8 = arith.constant 0 : index
    %c0_9 = arith.constant 0 : index
    %25 = vector.load %arg4[%c0_8, %c0_9] : memref<128x128xf32, #tpu.memory_space<vmem>>, vector<128x128xf32>
    tpu.vector_store %arg4[%c0_8, %c0_9], %24 {strides = array<i32>} : memref<128x128xf32, #tpu.memory_space<vmem>>, vector<128x128xf32>,
    return
  }
  func.func @transform_0(%arg0: i32, %arg1: i32) -> (i32, i32) {
    %c0_i32 = arith.constant 0 : i32
    %c0_i32_0 = arith.constant 0 : i32
    return %arg0, %c0_i32 : i32, i32
  }
  func.func @transform_1(%arg0: i32, %arg1: i32) -> (i32, i32) {
    %c0_i32 = arith.constant 0 : i32
    %c0_i32_0 = arith.constant 0 : i32
    return %c0_i32, %arg1 : i32, i32
  }
  func.func @transform_2(%arg0: i32, %arg1: i32) -> (i32, i32) {
    %c0_i32 = arith.constant 0 : i32
    return %arg0, %arg1 : i32, i32
  }
}

</mosaic_0001>

<llo_original>
// kernel: dist_linear.1
$region0: #{dist_linear.1}
  #allocation0 [shape = 'u32[]', space=smem, size = 0x4, offset = 0x4, fixed_abs, tag = 'smem constant byte address 0x4 - core index']
  #allocation1 [shape = 'u32[72,128]{1,0:T(1,128)}', space=vmem, size = 0x9000, scoped, tag = 'internal scratch']
  %s0 = inlined_call_operand.vmem [shape: f32[128,128], index: 0, kind: input, shape index: {}]
  %s1 = inlined_call_operand.vmem [shape: f32[128,128], index: 1, kind: input, shape index: {}]
  %s2 = inlined_call_operand.vmem [shape: f32[128,128], index: 2, kind: output, shape index: {}]
  %s3 = sld [smem:[#allocation0]]
  $region18: #{dist_linear.1} parent=0
    _
  %s5 = ssub.s32 1, %s3
  %s6 = scalar_select 0, %s5, %s3
  // Predicated region
  $region2: #{dist_linear.1} parent=0 // pred_check
    _
  $region3: #{dist_linear.1} parent=0 // pred_check_branch
    %8 = sbr.rel (0) target = $region5
  $region4: #{dist_linear.1} parent=0 // pred_region
    _
  $region5: #{dist_linear.1} parent=0 // pred_fallthru
    _
  // Predicated region
  $region6: #{dist_linear.1} parent=0 // pred_check
    _
  $region7: #{dist_linear.1} parent=0 // pred_check_branch
    %10 = sbr.rel (0) target = $region9
  $region8: #{dist_linear.1} parent=0 // pred_region
    _
  $region9: #{dist_linear.1} parent=0 // pred_fallthru
    _
  %v11 = vld [vmem:[%s0] sm:$0xff]
  %v12 = vld [vmem:[%s0 + $0x8] sm:$0xff]
  %v13 = vld [vmem:[%s0 + $0x10] sm:$0xff]
  %v14 = vld [vmem:[%s0 + $0x18] sm:$0xff]
  %v15 = vld [vmem:[%s0 + $0x20] sm:$0xff]
  %v16 = vld [vmem:[%s0 + $0x28] sm:$0xff]
  %v17 = vld [vmem:[%s0 + $0x30] sm:$0xff]
  %v18 = vld [vmem:[%s0 + $0x38] sm:$0xff]
  %v19 = vld [vmem:[%s0 + $0x40] sm:$0xff]
  %v20 = vld [vmem:[%s0 + $0x48] sm:$0xff]
  %v21 = vld [vmem:[%s0 + $0x50] sm:$0xff]
  %v22 = vld [vmem:[%s0 + $0x58] sm:$0xff]
  %v23 = vld [vmem:[%s0 + $0x60] sm:$0xff]
  %v24 = vld [vmem:[%s0 + $0x68] sm:$0xff]
  %v25 = vld [vmem:[%s0 + $0x70] sm:$0xff]
  %v26 = vld [vmem:[%s0 + $0x78] sm:$0xff]
  %v27 = vld [vmem:[%s1] sm:$0xff]
  %v28 = vld [vmem:[%s1 + $0x8] sm:$0xff]
  %v29 = vld [vmem:[%s1 + $0x10] sm:$0xff]
  %v30 = vld [vmem:[%s1 + $0x18] sm:$0xff]
  %v31 = vld [vmem:[%s1 + $0x20] sm:$0xff]
  %v32 = vld [vmem:[%s1 + $0x28] sm:$0xff]
  %v33 = vld [vmem:[%s1 + $0x30] sm:$0xff]
  %v34 = vld [vmem:[%s1 + $0x38] sm:$0xff]
  %v35 = vld [vmem:[%s1 + $0x40] sm:$0xff]
  %v36 = vld [vmem:[%s1 + $0x48] sm:$0xff]
  %v37 = vld [vmem:[%s1 + $0x50] sm:$0xff]
  %v38 = vld [vmem:[%s1 + $0x58] sm:$0xff]
  %v39 = vld [vmem:[%s1 + $0x60] sm:$0xff]
  %v40 = vld [vmem:[%s1 + $0x68] sm:$0xff]
  %v41 = vld [vmem:[%s1 + $0x70] sm:$0xff]
  %v42 = vld [vmem:[%s1 + $0x78] sm:$0xff]
  %v43 = vmul.f32 %v11, %v11
  %v44 = vmul.f32 %v12, %v12
  %v45 = vmul.f32 %v13, %v13
  %v46 = vmul.f32 %v14, %v14
  %v47 = vmul.f32 %v15, %v15
  %v48 = vmul.f32 %v16, %v16
  %v49 = vmul.f32 %v17, %v17
  %v50 = vmul.f32 %v18, %v18
  %v51 = vmul.f32 %v19, %v19
  %v52 = vmul.f32 %v20, %v20
  %v53 = vmul.f32 %v21, %v21
  %v54 = vmul.f32 %v22, %v22
  %v55 = vmul.f32 %v23, %v23
  %v56 = vmul.f32 %v24, %v24
  %v57 = vmul.f32 %v25, %v25
  %v58 = vmul.f32 %v26, %v26
  %59 = vadd.xlane.f32.xlu0 %v43
  %v60 = vpop.xlane.xlu0 %59
  %61 = vadd.xlane.f32.xlu0 %v44
  %v62 = vpop.xlane.xlu0 %61
  %63 = vadd.xlane.f32.xlu0 %v45
  %v64 = vpop.xlane.xlu0 %63
  %65 = vadd.xlane.f32.xlu0 %v46
  %v66 = vpop.xlane.xlu0 %65
  %67 = vadd.xlane.f32.xlu0 %v47
  %v68 = vpop.xlane.xlu0 %67
  %69 = vadd.xlane.f32.xlu0 %v48
  %v70 = vpop.xlane.xlu0 %69
  %71 = vadd.xlane.f32.xlu0 %v49
  %v72 = vpop.xlane.xlu0 %71
  %73 = vadd.xlane.f32.xlu0 %v50
  %v74 = vpop.xlane.xlu0 %73
  %75 = vadd.xlane.f32.xlu0 %v51
  %v76 = vpop.xlane.xlu0 %75
  %77 = vadd.xlane.f32.xlu0 %v52
  %v78 = vpop.xlane.xlu0 %77
  %79 = vadd.xlane.f32.xlu0 %v53
  %v80 = vpop.xlane.xlu0 %79
  %81 = vadd.xlane.f32.xlu0 %v54
  %v82 = vpop.xlane.xlu0 %81
  %83 = vadd.xlane.f32.xlu0 %v55
  %v84 = vpop.xlane.xlu0 %83
  %85 = vadd.xlane.f32.xlu0 %v56
  %v86 = vpop.xlane.xlu0 %85
  %87 = vadd.xlane.f32.xlu0 %v57
  %v88 = vpop.xlane.xlu0 %87
  %89 = vadd.xlane.f32.xlu0 %v58
  %v90 = vpop.xlane.xlu0 %89
  %v91 = vrsqrt.pop %v60
  %v92 = vmul.f32 %v91, %v60
  %v93 = vmul.f32 %v92, %v91
  %v94 = vmul.f32 0.5, %v93
  %v95 = vsub.f32 1.5, %v94
  %v96 = vmul.f32 %v91, %v95
  %v97 = vmul.f32 %v60, %v96
  %vm98 = vcmp.eq.f32.partialorder %v60, inf
  %v99 = vsel %vm98, %v60, %v97
  %vm100 = vcmp.eq.f32.partialorder %v60, 0.0
  %v101 = vand.u32 %v60, 2147483648
  %v102 = vsel %vm100, %v101, %v99
  %v103 = vrsqrt.pop %v62
  %v104 = vmul.f32 %v103, %v62
  %v105 = vmul.f32 %v104, %v103
  %v106 = vmul.f32 0.5, %v105
  %v107 = vsub.f32 1.5, %v106
  %v108 = vmul.f32 %v103, %v107
  %v109 = vmul.f32 %v62, %v108
  %vm110 = vcmp.eq.f32.partialorder %v62, inf
  %v111 = vsel %vm110, %v62, %v109
  %vm112 = vcmp.eq.f32.partialorder %v62, 0.0
  %v113 = vand.u32 %v62, 2147483648
  %v114 = vsel %vm112, %v113, %v111
  %v115 = vrsqrt.pop %v64
  %v116 = vmul.f32 %v115, %v64
  %v117 = vmul.f32 %v116, %v115
  %v118 = vmul.f32 0.5, %v117
  %v119 = vsub.f32 1.5, %v118
  %v120 = vmul.f32 %v115, %v119
  %v121 = vmul.f32 %v64, %v120
  %vm122 = vcmp.eq.f32.partialorder %v64, inf
  %v123 = vsel %vm122, %v64, %v121
  %vm124 = vcmp.eq.f32.partialorder %v64, 0.0
  %v125 = vand.u32 %v64, 2147483648
  %v126 = vsel %vm124, %v125, %v123
  %v127 = vrsqrt.pop %v66
  %v128 = vmul.f32 %v127, %v66
  %v129 = vmul.f32 %v128, %v127
  %v130 = vmul.f32 0.5, %v129
  %v131 = vsub.f32 1.5, %v130
  %v132 = vmul.f32 %v127, %v131
  %v133 = vmul.f32 %v66, %v132
  %vm134 = vcmp.eq.f32.partialorder %v66, inf
  %v135 = vsel %vm134, %v66, %v133
  %vm136 = vcmp.eq.f32.partialorder %v66, 0.0
  %v137 = vand.u32 %v66, 2147483648
  %v138 = vsel %vm136, %v137, %v135
  %v139 = vrsqrt.pop %v68
  %v140 = vmul.f32 %v139, %v68
  %v141 = vmul.f32 %v140, %v139
  %v142 = vmul.f32 0.5, %v141
  %v143 = vsub.f32 1.5, %v142
  %v144 = vmul.f32 %v139, %v143
  %v145 = vmul.f32 %v68, %v144
  %vm146 = vcmp.eq.f32.partialorder %v68, inf
  %v147 = vsel %vm146, %v68, %v145
  %vm148 = vcmp.eq.f32.partialorder %v68, 0.0
  %v149 = vand.u32 %v68, 2147483648
  %v150 = vsel %vm148, %v149, %v147
  %v151 = vrsqrt.pop %v70
  %v152 = vmul.f32 %v151, %v70
  %v153 = vmul.f32 %v152, %v151
  %v154 = vmul.f32 0.5, %v153
  %v155 = vsub.f32 1.5, %v154
  %v156 = vmul.f32 %v151, %v155
  %v157 = vmul.f32 %v70, %v156
  %vm158 = vcmp.eq.f32.partialorder %v70, inf
  %v159 = vsel %vm158, %v70, %v157
  %vm160 = vcmp.eq.f32.partialorder %v70, 0.0
  %v161 = vand.u32 %v70, 2147483648
  %v162 = vsel %vm160, %v161, %v159
  %v163 = vrsqrt.pop %v72
  %v164 = vmul.f32 %v163, %v72
  %v165 = vmul.f32 %v164, %v163
  %v166 = vmul.f32 0.5, %v165
  %v167 = vsub.f32 1.5, %v166
  %v168 = vmul.f32 %v163, %v167
  %v169 = vmul.f32 %v72, %v168
  %vm170 = vcmp.eq.f32.partialorder %v72, inf
  %v171 = vsel %vm170, %v72, %v169
  %vm172 = vcmp.eq.f32.partialorder %v72, 0.0
  %v173 = vand.u32 %v72, 2147483648
  %v174 = vsel %vm172, %v173, %v171
  %v175 = vrsqrt.pop %v74
  %v176 = vmul.f32 %v175, %v74
  %v177 = vmul.f32 %v176, %v175
  %v178 = vmul.f32 0.5, %v177
  %v179 = vsub.f32 1.5, %v178
  %v180 = vmul.f32 %v175, %v179
  %v181 = vmul.f32 %v74, %v180
  %vm182 = vcmp.eq.f32.partialorder %v74, inf
  %v183 = vsel %vm182, %v74, %v181
  %vm184 = vcmp.eq.f32.partialorder %v74, 0.0
  %v185 = vand.u32 %v74, 2147483648
  %v186 = vsel %vm184, %v185, %v183
  %v187 = vrsqrt.pop %v76
  %v188 = vmul.f32 %v187, %v76
  %v189 = vmul.f32 %v188, %v187
  %v190 = vmul.f32 0.5, %v189
  %v191 = vsub.f32 1.5, %v190
  %v192 = vmul.f32 %v187, %v191
  %v193 = vmul.f32 %v76, %v192
  %vm194 = vcmp.eq.f32.partialorder %v76, inf
  %v195 = vsel %vm194, %v76, %v193
  %vm196 = vcmp.eq.f32.partialorder %v76, 0.0
  %v197 = vand.u32 %v76, 2147483648
  %v198 = vsel %vm196, %v197, %v195
  %v199 = vrsqrt.pop %v78
  %v200 = vmul.f32 %v199, %v78
  %v201 = vmul.f32 %v200, %v199
  %v202 = vmul.f32 0.5, %v201
  %v203 = vsub.f32 1.5, %v202
  %v204 = vmul.f32 %v199, %v203
  %v205 = vmul.f32 %v78, %v204
  %vm206 = vcmp.eq.f32.partialorder %v78, inf
  %v207 = vsel %vm206, %v78, %v205
  %vm208 = vcmp.eq.f32.partialorder %v78, 0.0
  %v209 = vand.u32 %v78, 2147483648
  %v210 = vsel %vm208, %v209, %v207
  %v211 = vrsqrt.pop %v80
  %v212 = vmul.f32 %v211, %v80
  %v213 = vmul.f32 %v212, %v211
  %v214 = vmul.f32 0.5, %v213
  %v215 = vsub.f32 1.5, %v214
  %v216 = vmul.f32 %v211, %v215
  %v217 = vmul.f32 %v80, %v216
  %vm218 = vcmp.eq.f32.partialorder %v80, inf
  %v219 = vsel %vm218, %v80, %v217
  %vm220 = vcmp.eq.f32.partialorder %v80, 0.0
  %v221 = vand.u32 %v80, 2147483648
  %v222 = vsel %vm220, %v221, %v219
  %v223 = vrsqrt.pop %v82
  %v224 = vmul.f32 %v223, %v82
  %v225 = vmul.f32 %v224, %v223
  %v226 = vmul.f32 0.5, %v225
  %v227 = vsub.f32 1.5, %v226
  %v228 = vmul.f32 %v223, %v227
  %v229 = vmul.f32 %v82, %v228
  %vm230 = vcmp.eq.f32.partialorder %v82, inf
  %v231 = vsel %vm230, %v82, %v229
  %vm232 = vcmp.eq.f32.partialorder %v82, 0.0
  %v233 = vand.u32 %v82, 2147483648
  %v234 = vsel %vm232, %v233, %v231
  %v235 = vrsqrt.pop %v84
  %v236 = vmul.f32 %v235, %v84
  %v237 = vmul.f32 %v236, %v235
  %v238 = vmul.f32 0.5, %v237
  %v239 = vsub.f32 1.5, %v238
  %v240 = vmul.f32 %v235, %v239
  %v241 = vmul.f32 %v84, %v240
  %vm242 = vcmp.eq.f32.partialorder %v84, inf
  %v243 = vsel %vm242, %v84, %v241
  %vm244 = vcmp.eq.f32.partialorder %v84, 0.0
  %v245 = vand.u32 %v84, 2147483648
  %v246 = vsel %vm244, %v245, %v243
  %v247 = vrsqrt.pop %v86
  %v248 = vmul.f32 %v247, %v86
  %v249 = vmul.f32 %v248, %v247
  %v250 = vmul.f32 0.5, %v249
  %v251 = vsub.f32 1.5, %v250
  %v252 = vmul.f32 %v247, %v251
  %v253 = vmul.f32 %v86, %v252
  %vm254 = vcmp.eq.f32.partialorder %v86, inf
  %v255 = vsel %vm254, %v86, %v253
  %vm256 = vcmp.eq.f32.partialorder %v86, 0.0
  %v257 = vand.u32 %v86, 2147483648
  %v258 = vsel %vm256, %v257, %v255
  %v259 = vrsqrt.pop %v88
  %v260 = vmul.f32 %v259, %v88
  %v261 = vmul.f32 %v260, %v259
  %v262 = vmul.f32 0.5, %v261
  %v263 = vsub.f32 1.5, %v262
  %v264 = vmul.f32 %v259, %v263
  %v265 = vmul.f32 %v88, %v264
  %vm266 = vcmp.eq.f32.partialorder %v88, inf
  %v267 = vsel %vm266, %v88, %v265
  %vm268 = vcmp.eq.f32.partialorder %v88, 0.0
  %v269 = vand.u32 %v88, 2147483648
  %v270 = vsel %vm268, %v269, %v267
  %v271 = vrsqrt.pop %v90
  %v272 = vmul.f32 %v271, %v90
  %v273 = vmul.f32 %v272, %v271
  %v274 = vmul.f32 0.5, %v273
  %v275 = vsub.f32 1.5, %v274
  %v276 = vmul.f32 %v271, %v275
  %v277 = vmul.f32 %v90, %v276
  %vm278 = vcmp.eq.f32.partialorder %v90, inf
  %v279 = vsel %vm278, %v90, %v277
  %vm280 = vcmp.eq.f32.partialorder %v90, 0.0
  %v281 = vand.u32 %v90, 2147483648
  %v282 = vsel %vm280, %v281, %v279
  %v283 = vmul.f32 %v27, %v27
  %v284 = vmul.f32 %v28, %v28
  %v285 = vmul.f32 %v29, %v29
  %v286 = vmul.f32 %v30, %v30
  %v287 = vmul.f32 %v31, %v31
  %v288 = vmul.f32 %v32, %v32
  %v289 = vmul.f32 %v33, %v33
  %v290 = vmul.f32 %v34, %v34
  %v291 = vmul.f32 %v35, %v35
  %v292 = vmul.f32 %v36, %v36
  %v293 = vmul.f32 %v37, %v37
  %v294 = vmul.f32 %v38, %v38
  %v295 = vmul.f32 %v39, %v39
  %v296 = vmul.f32 %v40, %v40
  %v297 = vmul.f32 %v41, %v41
  %v298 = vmul.f32 %v42, %v42
  %v299 = vadd.f32 %v283, %v284
  %v300 = vadd.f32 %v299, %v285
  %v301 = vadd.f32 %v300, %v286
  %v302 = vadd.f32 %v301, %v287
  %v303 = vadd.f32 %v302, %v288
  %v304 = vadd.f32 %v303, %v289
  %v305 = vadd.f32 %v304, %v290
  %v306 = vadd.f32 %v305, %v291
  %v307 = vadd.f32 %v306, %v292
  %v308 = vadd.f32 %v307, %v293
  %v309 = vadd.f32 %v308, %v294
  %v310 = vadd.f32 %v309, %v295
  %v311 = vadd.f32 %v310, %v296
  %v312 = vadd.f32 %v311, %v297
  %v313 = vadd.f32 %v312, %v298
  %v314 = vrot.slane %v313, 4
  %v315 = vadd.f32 %v313, %v314
  %v316 = vrot.slane %v315, 2
  %v317 = vadd.f32 %v315, %v316
  %v318 = vrot.slane %v317, 1
  %v319 = vadd.f32 %v317, %v318
  %v320 = vrsqrt.pop %v319
  %v321 = vmul.f32 %v320, %v319
  %v322 = vmul.f32 %v321, %v320
  %v323 = vmul.f32 0.5, %v322
  %v324 = vsub.f32 1.5, %v323
  %v325 = vmul.f32 %v320, %v324
  %v326 = vmul.f32 %v319, %v325
  %vm327 = vcmp.eq.f32.partialorder %v319, inf
  %v328 = vsel %vm327, %v319, %v326
  %vm329 = vcmp.eq.f32.partialorder %v319, 0.0
  %v330 = vand.u32 %v319, 2147483648
  %v331 = vsel %vm329, %v330, %v328
  %v332 = vadd.f32 %v102, 1e-05
  %v333 = vadd.f32 %v114, 1e-05
  %v334 = vadd.f32 %v126, 1e-05
  %v335 = vadd.f32 %v138, 1e-05
  %v336 = vadd.f32 %v150, 1e-05
  %v337 = vadd.f32 %v162, 1e-05
  %v338 = vadd.f32 %v174, 1e-05
  %v339 = vadd.f32 %v186, 1e-05
  %v340 = vadd.f32 %v198, 1e-05
  %v341 = vadd.f32 %v210, 1e-05
  %v342 = vadd.f32 %v222, 1e-05
  %v343 = vadd.f32 %v234, 1e-05
  %v344 = vadd.f32 %v246, 1e-05
  %v345 = vadd.f32 %v258, 1e-05
  %v346 = vadd.f32 %v270, 1e-05
  %v347 = vadd.f32 %v282, 1e-05
  %v348 = vrcp.pop %v332
  %v349 = vrcp.pop %v333
  %v350 = vrcp.pop %v334
  %v351 = vrcp.pop %v335
  %v352 = vrcp.pop %v336
  %v353 = vrcp.pop %v337
  %v354 = vrcp.pop %v338
  %v355 = vrcp.pop %v339
  %v356 = vrcp.pop %v340
  %v357 = vrcp.pop %v341
  %v358 = vrcp.pop %v342
  %v359 = vrcp.pop %v343
  %v360 = vrcp.pop %v344
  %v361 = vrcp.pop %v345
  %v362 = vrcp.pop %v346
  %v363 = vrcp.pop %v347
  %v364 = vadd.f32 %v331, 1e-05
  %v365 = vrcp.pop %v364
  %v366 = vmul.f32 %v348, 10.0
  %v367 = vmul.f32 %v349, 10.0
  %v368 = vmul.f32 %v350, 10.0
  %v369 = vmul.f32 %v351, 10.0
  %v370 = vmul.f32 %v352, 10.0
  %v371 = vmul.f32 %v353, 10.0
  %v372 = vmul.f32 %v354, 10.0
  %v373 = vmul.f32 %v355, 10.0
  %v374 = vmul.f32 %v356, 10.0
  %v375 = vmul.f32 %v357, 10.0
  %v376 = vmul.f32 %v358, 10.0
  %v377 = vmul.f32 %v359, 10.0
  %v378 = vmul.f32 %v360, 10.0
  %v379 = vmul.f32 %v361, 10.0
  %v380 = vmul.f32 %v362, 10.0
  %v381 = vmul.f32 %v363, 10.0
  %v382 = vmul.f32 %v11, %v366
  %v383 = vmul.f32 %v12, %v367
  %v384 = vmul.f32 %v13, %v368
  %v385 = vmul.f32 %v14, %v369
  %v386 = vmul.f32 %v15, %v370
  %v387 = vmul.f32 %v16, %v371
  %v388 = vmul.f32 %v17, %v372
  %v389 = vmul.f32 %v18, %v373
  %v390 = vmul.f32 %v19, %v374
  %v391 = vmul.f32 %v20, %v375
  %v392 = vmul.f32 %v21, %v376
  %v393 = vmul.f32 %v22, %v377
  %v394 = vmul.f32 %v23, %v378
  %v395 = vmul.f32 %v24, %v379
  %v396 = vmul.f32 %v25, %v380
  %v397 = vmul.f32 %v26, %v381
  %v398 = vpack.c.bf16 %v383, %v382
  %v399 = vpack.c.bf16 %v385, %v384
  %v400 = vpack.c.bf16 %v387, %v386
  %v401 = vpack.c.bf16 %v389, %v388
  %v402 = vpack.c.bf16 %v391, %v390
  %v403 = vpack.c.bf16 %v393, %v392
  %v404 = vpack.c.bf16 %v395, %v394
  %v405 = vpack.c.bf16 %v397, %v396
  %v406 = vmul.f32 %v27, %v365
  %v407 = vmul.f32 %v28, %v365
  %v408 = vmul.f32 %v29, %v365
  %v409 = vmul.f32 %v30, %v365
  %v410 = vmul.f32 %v31, %v365
  %v411 = vmul.f32 %v32, %v365
  %v412 = vmul.f32 %v33, %v365
  %v413 = vmul.f32 %v34, %v365
  %v414 = vmul.f32 %v35, %v365
  %v415 = vmul.f32 %v36, %v365
  %v416 = vmul.f32 %v37, %v365
  %v417 = vmul.f32 %v38, %v365
  %v418 = vmul.f32 %v39, %v365
  %v419 = vmul.f32 %v40, %v365
  %v420 = vmul.f32 %v41, %v365
  %v421 = vmul.f32 %v42, %v365
  %v422 = vpack.c.bf16 %v407, %v406
  %v423 = vpack.c.bf16 %v409, %v408
  %v424 = vpack.c.bf16 %v411, %v410
  %v425 = vpack.c.bf16 %v413, %v412
  %v426 = vpack.c.bf16 %v415, %v414
  %v427 = vpack.c.bf16 %v417, %v416
  %v428 = vpack.c.bf16 %v419, %v418
  %v429 = vpack.c.bf16 %v421, %v420
  %430 = vmatpush.bf16.msra.mxu0 %v429
  %431 = vmatpush.bf16.msra.mxu0 %v428
  %432 = vmatpush.bf16.msra.mxu0 %v427
  %433 = vmatpush.bf16.msra.mxu0 %v426
  %434 = vmatpush.bf16.msra.mxu0 %v425
  %435 = vmatpush.bf16.msra.mxu0 %v424
  %436 = vmatpush.bf16.msra.mxu0 %v423
  %437 = vmatpush.bf16.msra.mxu0 %v422
  %438 = vmatmul.bf16.gmra.mxu0 %v398
  %v439 = vpop.f32.mrf.mxu0
  %v440 = vadd.f32 0.0, %v439
  %v441 = vpop.f32.mrf.mxu0
  %v442 = vadd.f32 0.0, %v441
  %443 = vmatmul.bf16.gmra.mxu0 %v399
  %v444 = vpop.f32.mrf.mxu0
  %v445 = vadd.f32 0.0, %v444
  %v446 = vpop.f32.mrf.mxu0
  %v447 = vadd.f32 0.0, %v446
  %448 = vmatmul.bf16.gmra.mxu0 %v400
  %v449 = vpop.f32.mrf.mxu0
  %v450 = vadd.f32 0.0, %v449
  %v451 = vpop.f32.mrf.mxu0
  %v452 = vadd.f32 0.0, %v451
  %453 = vmatmul.bf16.gmra.mxu0 %v401
  %v454 = vpop.f32.mrf.mxu0
  %v455 = vadd.f32 0.0, %v454
  %v456 = vpop.f32.mrf.mxu0
  %v457 = vadd.f32 0.0, %v456
  %458 = vmatmul.bf16.gmra.mxu0 %v402
  %v459 = vpop.f32.mrf.mxu0
  %v460 = vadd.f32 0.0, %v459
  %v461 = vpop.f32.mrf.mxu0
  %v462 = vadd.f32 0.0, %v461
  %463 = vmatmul.bf16.gmra.mxu0 %v403
  %v464 = vpop.f32.mrf.mxu0
  %v465 = vadd.f32 0.0, %v464
  %v466 = vpop.f32.mrf.mxu0
  %v467 = vadd.f32 0.0, %v466
  %468 = vmatmul.bf16.gmra.mxu0 %v404
  %v469 = vpop.f32.mrf.mxu0
  %v470 = vadd.f32 0.0, %v469
  %v471 = vpop.f32.mrf.mxu0
  %v472 = vadd.f32 0.0, %v471
  %473 = vmatmul.bf16.gmra.mxu0 %v405
  %v474 = vpop.f32.mrf.mxu0
  %v475 = vadd.f32 0.0, %v474
  %v476 = vpop.f32.mrf.mxu0
  %v477 = vadd.f32 0.0, %v476
  %478 = vdwg.mxu0
  %479 = vst [vmem:[%s2] sm:$0xff] %v440
  %480 = vst [vmem:[%s2 + $0x8] sm:$0xff] %v442
  %481 = vst [vmem:[%s2 + $0x10] sm:$0xff] %v445
  %482 = vst [vmem:[%s2 + $0x18] sm:$0xff] %v447
  %483 = vst [vmem:[%s2 + $0x20] sm:$0xff] %v450
  %484 = vst [vmem:[%s2 + $0x28] sm:$0xff] %v452
  %485 = vst [vmem:[%s2 + $0x30] sm:$0xff] %v455
  %486 = vst [vmem:[%s2 + $0x38] sm:$0xff] %v457
  %487 = vst [vmem:[%s2 + $0x40] sm:$0xff] %v460
  %488 = vst [vmem:[%s2 + $0x48] sm:$0xff] %v462
  %489 = vst [vmem:[%s2 + $0x50] sm:$0xff] %v465
  %490 = vst [vmem:[%s2 + $0x58] sm:$0xff] %v467
  %491 = vst [vmem:[%s2 + $0x60] sm:$0xff] %v470
  %492 = vst [vmem:[%s2 + $0x68] sm:$0xff] %v472
  %493 = vst [vmem:[%s2 + $0x70] sm:$0xff] %v475
  %494 = vst [vmem:[%s2 + $0x78] sm:$0xff] %v477
  // Predicated region
  $region10: #{dist_linear.1} parent=0 // pred_check
    _
  $region11: #{dist_linear.1} parent=0 // pred_check_branch
    %496 = sbr.rel (0) target = $region13
  $region12: #{dist_linear.1} parent=0 // pred_region
    _
  $region13: #{dist_linear.1} parent=0 // pred_fallthru
    _
  // Predicated region
  $region14: #{dist_linear.1} parent=0 // pred_check
    _
  $region15: #{dist_linear.1} parent=0 // pred_check_branch
    %498 = sbr.rel (0) target = $region17
  $region16: #{dist_linear.1} parent=0 // pred_region
    _
  $region17: #{dist_linear.1} parent=0 // pred_fallthru
    _

</llo_original>
